<compile_context>
chip_gen: v5e
topology: v5e:2x2
jax: 0.10.0
libtpu: 0.0.40
codegen_flags: <defaults>
</compile_context>

<pallas_src>
import functools
import math

import jax
import jax.numpy as jnp
from jax.experimental import pallas as pl
from jax.experimental.pallas import tpu as pltpu

LANE = 128  # vreg lane width / MXU tile width


def _round_up(x, m):
    return (x + m - 1) // m * m


def _cdiv(a, b):
    return (a + b - 1) // b


@functools.lru_cache(maxsize=None)
def _vmem_capacity_bytes():
    try:
        return int(pltpu.get_tpu_info().vmem_capacity_bytes)
    except Exception:
        return 64 * 1024 * 1024  # conservative default (v7x per-TensorCore)


def _vmem_budgets():
    cap = _vmem_capacity_bytes()
    # ~48 MiB on v7x (64 MiB physical), ~96 MiB on v5e/v6e (128 MiB physical).
    vmem_limit = min(int(cap * 3 // 4), 100 * 1024 * 1024)
    # Leave ~15% headroom under the limit for compiler-internal scratch/spills.
    tile_budget = int(vmem_limit * 0.85)
    return vmem_limit, tile_budget


def _pad_2d(a, rows, cols, dtype):
    """Cast + zero-pad a 2-D array; no-op if already the target shape/dtype."""
    a = a.astype(dtype)
    if a.shape == (rows, cols):
        return a
    return jnp.zeros((rows, cols), dtype).at[: a.shape[0], : a.shape[1]].set(a)


def _pad_row(a, cols, dtype):
    a = a.reshape(1, -1).astype(dtype)
    if a.shape[1] == cols:
        return a
    return jnp.zeros((1, cols), dtype).at[:, : a.shape[1]].set(a)


def prepare_mlp_params(w1, b1, w2, b2, *, mxu_dtype=jnp.bfloat16):
    """Pre-pad / pre-cast the parameters once, outside the per-call hot path."""
    op = jnp.dtype(mxu_dtype)
    din_p = _round_up(w1.shape[0], LANE)
    dh_p = _round_up(max(w1.shape[1], w2.shape[0]), LANE)
    dout_p = _round_up(w2.shape[1], LANE)
    return (_pad_2d(w1, din_p, dh_p, op),
            _pad_row(b1, dh_p, jnp.float32),
            _pad_2d(w2, dh_p, dout_p, op),
            _pad_row(b2, dout_p, jnp.float32))


# ----------------------------------------------------------------------------- kernels
def _mlp_kernel_resident(x_ref, w1_ref, b1_ref, w2_ref, b2_ref, o_ref, *, approx_gelu):
    # fc1: [tm, Din] @ [Din, Dh] on the MXU with f32 accumulation.
    h = jnp.dot(x_ref[...], w1_ref[...], preferred_element_type=jnp.float32)
    h = jax.nn.gelu(h + b1_ref[...], approximate=approx_gelu)
    # TODO(synk): nn.Dropout treated as identity (eval-mode semantics); training
    # dropout would use pltpu.prng_seed / pltpu.prng_random_bits in-kernel.
    o = jnp.dot(h.astype(w2_ref.dtype), w2_ref[...],
                preferred_element_type=jnp.float32)
    o_ref[...] = (o + b2_ref[...]).astype(o_ref.dtype)


def _mlp_kernel_dh_split(x_ref, w1_ref, b1_ref, w2_ref, b2_ref, o_ref, acc_ref,
                         *, approx_gelu):
    k = pl.program_id(1)
    h = jnp.dot(x_ref[...], w1_ref[...], preferred_element_type=jnp.float32)
    h = jax.nn.gelu(h + b1_ref[...], approximate=approx_gelu)
    part = jnp.dot(h.astype(w2_ref.dtype), w2_ref[...],
                   preferred_element_type=jnp.float32)

    @pl.when(k == 0)
    def _():
        acc_ref[...] = part

    @pl.when(k > 0)
    def _():
        acc_ref[...] += part

    @pl.when(k == pl.num_programs(1) - 1)
    def _():
        o_ref[...] = (acc_ref[...] + b2_ref[...]).astype(o_ref.dtype)


# ----------------------------------------------------------------------------- planning
def _plan_tiles(M, din_p, dh_p, dout_p, op_itemsize, out_itemsize, align, budget,
                tile_m=None, tile_dh=None):
    """Return (mode, tile_m, tile_dh); mode in {"resident", "split"}."""
    m_aligned = _round_up(max(M, 1), align)

    # per token-row VMEM cost: pipelined x/out tiles + f32 intermediates.
    per_row = (2 * din_p * op_itemsize                       # x tile (double buffered)
               + 2 * dout_p * out_itemsize                   # out tile (double buffered)
               + dh_p * 4                                    # fc1 f32 intermediate
               + (dh_p * op_itemsize if op_itemsize < 4 else 0)  # bf16 cast of h
               + dout_p * 4)                                 # fc2 f32 result

    force_split = tile_dh is not None and tile_dh < dh_p
    if not force_split:
        resident = ((din_p * dh_p + dh_p * dout_p) * op_itemsize  # single-buffered weights
                    + (dh_p + dout_p) * 4)                        # f32 biases
        if resident + per_row * align <= budget:
            if tile_m is None:
                avail = budget - resident
                tile_m = min(1024, m_aligned,
                             max(align, (avail // per_row) // align * align))
                # >= 4 grid steps (2 per v7x TensorCore) when the problem allows,
                # but keep tiles >= 512 rows on large problems.
                if m_aligned // tile_m < 4:
                    floor_rows = 512 if m_aligned >= 4 * 512 else align
                    tile_m = min(tile_m,
                                 max(floor_rows, _round_up(_cdiv(m_aligned, 4), align)))
            tile_m = max(align, min(_round_up(tile_m, align), m_aligned))
            return "resident", tile_m, dh_p

    # Hidden-dim split fallback: stream weight chunks, keep token tiles large.
    if tile_m is None:
        tile_m = min(512, m_aligned)
    tile_m = max(align, min(_round_up(tile_m, align), m_aligned))
    if tile_dh is None:
        fixed = tile_m * (2 * din_p * op_itemsize + 2 * dout_p * out_itemsize
                          + 2 * dout_p * 4)                  # acc scratch + f32 partial
        per_col = (2 * (din_p + dout_p) * op_itemsize        # w1/w2 chunks (double buffered)
                   + 2 * 4                                   # b1 chunk
                   + tile_m * (4 + (op_itemsize if op_itemsize < 4 else 0)))  # h chunk
        avail = max(budget - fixed, per_col * LANE)
        tile_dh = (avail // per_col) // LANE * LANE
    tile_dh = max(LANE, _round_up(min(tile_dh, dh_p), LANE))
    return "split", tile_m, tile_dh


# ----------------------------------------------------------------------------- wrapper
def mlp_forward(x, w1, b1, w2, b2, *, out_features=None,
                mxu_dtype=jnp.bfloat16, approx_gelu=None,
                tile_m=None, tile_dh=None, single_buffer_weights=True):
    """Fused fc1 -> GELU -> (drop=id) -> fc2 -> (drop=id).

    x:  [..., in_features];  w1: [in, hidden];  b1: [hidden];
    w2: [hidden, out];       b2: [out].
    Params may be passed pre-padded (prepare_mlp_params); then pass out_features.
    approx_gelu=None -> tanh GELU for the bf16 path, exact erf for f32.
    """
    orig_shape = x.shape
    din = x.shape[-1]
    M = int(math.prod(orig_shape[:-1])) if len(orig_shape) > 1 else 1
    dout = int(out_features) if out_features is not None else int(w2.shape[-1])
    out_dtype = x.dtype

    op_dtype = jnp.dtype(mxu_dtype) if mxu_dtype is not None else jnp.dtype(x.dtype)
    op_itemsize = op_dtype.itemsize
    out_itemsize = jnp.dtype(out_dtype).itemsize
    align = max(8, 32 // op_itemsize)  # sublane packing: (8,128) f32, (16,128) bf16
    if approx_gelu is None:
        approx_gelu = op_itemsize < 4  # tanh GELU (EUP-routed) for the bf16 fast path

    din_p = _round_up(max(din, w1.shape[0]), LANE)
    dh_p = _round_up(max(w1.shape[1], w2.shape[0]), LANE)
    dout_p = _round_up(max(dout, w2.shape[1]), LANE)

    vmem_limit, tile_budget = _vmem_budgets()
    mode, tile_m, tile_dh = _plan_tiles(M, din_p, dh_p, dout_p, op_itemsize,
                                        out_itemsize, align, tile_budget,
                                        tile_m=tile_m, tile_dh=tile_dh)
    if mode == "split":
        dh_p = _round_up(dh_p, tile_dh)

    m_p = _round_up(M, tile_m)

    # Zero-pad to lane-dense slabs (no-ops when already padded / right dtype).
    xf = _pad_2d(x.reshape(M, din), m_p, din_p, op_dtype)
    w1p = _pad_2d(w1, din_p, dh_p, op_dtype)
    w2p = _pad_2d(w2, dh_p, dout_p, op_dtype)
    b1p = _pad_row(b1, dh_p, jnp.float32)
    b2p = _pad_row(b2, dout_p, jnp.float32)

    n_m = m_p // tile_m
    weight_bytes = (w1p.size + w2p.size) * op_itemsize + (b1p.size + b2p.size) * 4
    cost = pl.CostEstimate(
        flops=2 * M * din_p * dh_p + 2 * M * dh_p * dout_p,
        transcendentals=M * dh_p,
        bytes_accessed=(xf.size * op_itemsize
                        + weight_bytes * (1 if mode == "resident" else n_m)
                        + m_p * dout_p * out_itemsize),
    )

    if mode == "resident":
        grid = (n_m,)
        dims = ("parallel",)
        kernel = functools.partial(_mlp_kernel_resident, approx_gelu=approx_gelu)
        scratch = []

        def build_specs(single_buffer):
            def const_spec(shape):
                if single_buffer:
                    return pl.BlockSpec(shape, lambda i: (0, 0),
                                        pipeline_mode=pl.Buffered(1))
                return pl.BlockSpec(shape, lambda i: (0, 0))
            in_specs = [
                pl.BlockSpec((tile_m, din_p), lambda i: (i, 0)),   # x tile (pipelined)
                const_spec((din_p, dh_p)),                         # w1 (VMEM-resident)
                const_spec((1, dh_p)),                             # b1
                const_spec((dh_p, dout_p)),                        # w2
                const_spec((1, dout_p)),                           # b2
            ]
            out_specs = pl.BlockSpec((tile_m, dout_p), lambda i: (i, 0))
            return in_specs, out_specs
    else:
        n_dh = dh_p // tile_dh
        grid = (n_m, n_dh)
        dims = ("parallel", "arbitrary")
        kernel = functools.partial(_mlp_kernel_dh_split, approx_gelu=approx_gelu)
        scratch = [pltpu.VMEM((tile_m, dout_p), jnp.float32)]

        def build_specs(single_buffer):
            if single_buffer:
                b2_spec = pl.BlockSpec((1, dout_p), lambda i, k: (0, 0),
                                       pipeline_mode=pl.Buffered(1))
            else:
                b2_spec = pl.BlockSpec((1, dout_p), lambda i, k: (0, 0))
            in_specs = [
                pl.BlockSpec((tile_m, din_p), lambda i, k: (i, 0)),   # x tile
                pl.BlockSpec((din_p, tile_dh), lambda i, k: (0, k)),  # w1 chunk (streamed)
                pl.BlockSpec((1, tile_dh), lambda i, k: (0, k)),      # b1 chunk
                pl.BlockSpec((tile_dh, dout_p), lambda i, k: (k, 0)), # w2 chunk (streamed)
                b2_spec,                                              # b2 (grid-invariant)
            ]
            out_specs = pl.BlockSpec((tile_m, dout_p), lambda i, k: (i, 0))
            return in_specs, out_specs

    def run(single_buffer):
        in_specs, out_specs = build_specs(single_buffer)
        return pl.pallas_call(
            kernel,
            out_shape=jax.ShapeDtypeStruct((m_p, dout_p), out_dtype),
            grid_spec=pltpu.PrefetchScalarGridSpec(
                num_scalar_prefetch=0, grid=grid,
                in_specs=in_specs, out_specs=out_specs,
                scratch_shapes=scratch),
            compiler_params=pltpu.CompilerParams(
                dimension_semantics=dims, vmem_limit_bytes=vmem_limit),
            cost_estimate=cost,
        )(xf, w1p, b1p, w2p, b2p)

    if single_buffer_weights:
        try:
            out_flat = run(True)
        except Exception:
            # pl.Buffered(1) (single-buffering of grid-invariant operands) is not
            # available on this jax version; fall back to the default.  The
            # constant index_map still means the weights are fetched only once.
            out_flat = run(False)
    else:
        out_flat = run(False)

    return out_flat[:M, :dout].reshape(orig_shape[:-1] + (dout,))


def init_linear_params(key, fan_in, fan_out, dtype=jnp.float32):
    """Deterministic init mimicking torch.nn.Linear defaults (kaiming_uniform a=sqrt(5))."""
    kw, kb = jax.random.split(key)
    bound = 1.0 / math.sqrt(fan_in)
    w = jax.random.uniform(kw, (fan_in, fan_out), dtype, -bound, bound)  # stored [in, out]
    b = jax.random.uniform(kb, (fan_out,), dtype, -bound, bound)
    return w, b


if __name__ == "__main__":
    # config.mlp: in_features=32, hidden_features=64, out_features=32, drop=0.0
    B, S = 2, 8
    in_features, hidden_features, out_features = 32, 64, 32

    key = jax.random.PRNGKey(0)
    kx, k1, k2 = jax.random.split(key, 3)
    x = jax.random.normal(kx, (B, S, in_features), jnp.float32)
    w1, b1 = init_linear_params(k1, in_features, hidden_features)
    w2, b2 = init_linear_params(k2, hidden_features, out_features)

    with jax.default_matmul_precision("highest"):
        ref_erf = jax.nn.gelu(x @ w1 + b1, approximate=False) @ w2 + b2   # torch nn.GELU()
        ref_tanh = jax.nn.gelu(x @ w1 + b1, approximate=True) @ w2 + b2

    # 1) f32 MXU operands (parity path).  tanh GELU is exercised here (pass
    #    approx_gelu=False for exact-erf torch semantics at a ~1e-3 delta).
    out_f32 = jax.block_until_ready(
        mlp_forward(x, w1, b1, w2, b2, mxu_dtype=jnp.float32, approx_gelu=True))
    assert out_f32.shape == (B, S, out_features)
    assert jnp.allclose(out_f32, ref_tanh, atol=1e-4, rtol=1e-4)
    assert jnp.allclose(out_f32, ref_erf, atol=2e-2, rtol=2e-2)

    # 2) default fast path: bf16 MXU operands, tanh GELU, pre-padded params
    #    (padding copies hoisted out of the per-call hot path).
    pw1, pb1, pw2, pb2 = prepare_mlp_params(w1, b1, w2, b2)
    out_bf16 = jax.block_until_ready(
        mlp_forward(x, pw1, pb1, pw2, pb2, out_features=out_features))
    assert out_bf16.shape == (B, S, out_features)
    assert jnp.allclose(out_bf16, ref_erf, atol=5e-2, rtol=5e-2)

    # 3) hidden-dim-split fallback (used when weights do not fit the VMEM
    #    budget), forced here via tile_dh on a slightly larger hidden size.
    in2, hid2, out2 = 64, 256, 64
    kx2, k3, k4 = jax.random.split(jax.random.PRNGKey(1), 3)
    x2 = jax.random.normal(kx2, (B, S, in2), jnp.float32)
    w1b, b1b = init_linear_params(k3, in2, hid2)
    w2b, b2b = init_linear_params(k4, hid2, out2)
    with jax.default_matmul_precision("highest"):
        ref2 = jax.nn.gelu(x2 @ w1b + b1b, approximate=True) @ w2b + b2b
    out_split = jax.block_until_ready(
        mlp_forward(x2, w1b, b1b, w2b, b2b, mxu_dtype=jnp.float32,
                    approx_gelu=True, tile_dh=128))
    assert out_split.shape == (B, S, out2)
    assert jnp.allclose(out_split, ref2, atol=1e-4, rtol=1e-4)

    print("KERNEL_OK")
</pallas_src>

<mosaic_0001>
module attributes {stable_mosaic.version = 11 : i64} {
  func.func @_mlp_kernel_resident(%arg0: i32, %arg1: memref<8x128xf32, #tpu.memory_space<vmem>>, %arg2: memref<128x128xf32, #tpu.memory_space<vmem>>, %arg3: memref<1x128xf32, #tpu.memory_space<vmem>>, %arg4: memref<128x128xf32, #tpu.memory_space<vmem>>, %arg5: memref<1x128xf32, #tpu.memory_space<vmem>>, %arg6: memref<8x128xf32, #tpu.memory_space<vmem>>) attributes {dimension_semantics = [#tpu.dimension_semantics<parallel>], iteration_bounds = array<i64: 2>, scalar_prefetch = 0 : i64, scratch_operands = 0 : i64, tpu.core_type = #tpu.core_type<tc>, window_params = [{transform_indices = @transform_0, window_bounds = array<i64: 8, 128>}, {pipeline_mode = #tpu.pipeline_mode<synchronous>, transform_indices = @transform_1, window_bounds = array<i64: 128, 128>}, {pipeline_mode = #tpu.pipeline_mode<synchronous>, transform_indices = @transform_2, window_bounds = array<i64: 1, 128>}, {pipeline_mode = #tpu.pipeline_mode<synchronous>, transform_indices = @transform_3, window_bounds = array<i64: 128, 128>}, {pipeline_mode = #tpu.pipeline_mode<synchronous>, transform_indices = @transform_4, window_bounds = array<i64: 1, 128>}, {transform_indices = @transform_5, window_bounds = array<i64: 8, 128>}]} {
    %c0 = arith.constant 0 : index
    %c0_0 = arith.constant 0 : index
    %0 = vector.load %arg1[%c0, %c0_0] : memref<8x128xf32, #tpu.memory_space<vmem>>, vector<8x128xf32>
    %c0_1 = arith.constant 0 : index
    %c0_2 = arith.constant 0 : index
    %1 = vector.load %arg2[%c0_1, %c0_2] : memref<128x128xf32, #tpu.memory_space<vmem>>, vector<128x128xf32>
    %cst = arith.constant dense<0.000000e+00> : vector<8x128xf32>
    %2 = tpu.matmul %0, %1, %cst {dimension_numbers = #tpu.dot_dimension_numbers<[1], [0], [0], [1], [0, 0, 1, 1], [], []>} : vector<8x128xf32>, vector<128x128xf32>, vector<8x128xf32> -> vector<8x128xf32>
    %c0_3 = arith.constant 0 : index
    %c0_4 = arith.constant 0 : index
    %3 = vector.load %arg3[%c0_3, %c0_4] : memref<1x128xf32, #tpu.memory_space<vmem>>, vector<1x128xf32>
    %4 = vector.broadcast %3 : vector<1x128xf32> to vector<8x128xf32>
    %5 = arith.addf %2, %4 : vector<8x128xf32>
    %6 = arith.mulf %5, %5 : vector<8x128xf32>
    %7 = arith.mulf %5, %6 : vector<8x128xf32>
    %cst_5 = arith.constant 4.471500e-02 : f32
    %8 = vector.broadcast %cst_5 : f32 to vector<8x128xf32>
    %9 = arith.mulf %8, %7 : vector<8x128xf32>
    %10 = arith.addf %5, %9 : vector<8x128xf32>
    %cst_6 = arith.constant 0.797884583 : f32
    %11 = vector.broadcast %cst_6 : f32 to vector<8x128xf32>
    %12 = arith.mulf %11, %10 : vector<8x128xf32>
    %13 = math.tanh %12 : vector<8x128xf32>
    %cst_7 = arith.constant 1.000000e+00 : f32
    %14 = vector.broadcast %cst_7 : f32 to vector<8x128xf32>
    %15 = arith.addf %14, %13 : vector<8x128xf32>
    %cst_8 = arith.constant 5.000000e-01 : f32
    %16 = vector.broadcast %cst_8 : f32 to vector<8x128xf32>
    %17 = arith.mulf %16, %15 : vector<8x128xf32>
    %18 = arith.mulf %5, %17 : vector<8x128xf32>
    %c0_9 = arith.constant 0 : index
    %c0_10 = arith.constant 0 : index
    %19 = vector.load %arg4[%c0_9, %c0_10] : memref<128x128xf32, #tpu.memory_space<vmem>>, vector<128x128xf32>
    %cst_11 = arith.constant dense<0.000000e+00> : vector<8x128xf32>
    %20 = tpu.matmul %18, %19, %cst_11 {dimension_numbers = #tpu.dot_dimension_numbers<[1], [0], [0], [1], [0, 0, 1, 1], [], []>} : vector<8x128xf32>, vector<128x128xf32>, vector<8x128xf32> -> vector<8x128xf32>
    %c0_12 = arith.constant 0 : index
    %c0_13 = arith.constant 0 : index
    %21 = vector.load %arg5[%c0_12, %c0_13] : memref<1x128xf32, #tpu.memory_space<vmem>>, vector<1x128xf32>
    %22 = vector.broadcast %21 : vector<1x128xf32> to vector<8x128xf32>
    %23 = arith.addf %20, %22 : vector<8x128xf32>
    %c0_14 = arith.constant 0 : index
    %c0_15 = arith.constant 0 : index
    %24 = vector.load %arg6[%c0_14, %c0_15] : memref<8x128xf32, #tpu.memory_space<vmem>>, vector<8x128xf32>
    tpu.vector_store %arg6[%c0_14, %c0_15], %23 {strides = array<i32>} : memref<8x128xf32, #tpu.memory_space<vmem>>, vector<8x128xf32>,
    return
  }
  func.func @transform_0(%arg0: i32) -> (i32, i32) {
    %c0_i32 = arith.constant 0 : i32
    %c0_i32_0 = arith.constant 0 : i32
    return %arg0, %c0_i32 : i32, i32
  }
  func.func @transform_1(%arg0: i32) -> (i32, i32) {
    %c0_i32 = arith.constant 0 : i32
    %c0_i32_0 = arith.constant 0 : i32
    %c0_i32_1 = arith.constant 0 : i32
    return %c0_i32, %c0_i32_0 : i32, i32
  }
  func.func @transform_2(%arg0: i32) -> (i32, i32) {
    %c0_i32 = arith.constant 0 : i32
    %c0_i32_0 = arith.constant 0 : i32
    %c0_i32_1 = arith.constant 0 : i32
    return %c0_i32, %c0_i32_0 : i32, i32
  }
  func.func @transform_3(%arg0: i32) -> (i32, i32) {
    %c0_i32 = arith.constant 0 : i32
    %c0_i32_0 = arith.constant 0 : i32
    %c0_i32_1 = arith.constant 0 : i32
    return %c0_i32, %c0_i32_0 : i32, i32
  }
  func.func @transform_4(%arg0: i32) -> (i32, i32) {
    %c0_i32 = arith.constant 0 : i32
    %c0_i32_0 = arith.constant 0 : i32
    %c0_i32_1 = arith.constant 0 : i32
    return %c0_i32, %c0_i32_0 : i32, i32
  }
  func.func @transform_5(%arg0: i32) -> (i32, i32) {
    %c0_i32 = arith.constant 0 : i32
    %c0_i32_0 = arith.constant 0 : i32
    return %arg0, %c0_i32 : i32, i32
  }
}

module attributes {stable_mosaic.version = 11 : i64} {
  func.func @_mlp_kernel_resident(%arg0: i32, %arg1: memref<8x128xf32, #tpu.memory_space<vmem>>, %arg2: memref<128x128xf32, #tpu.memory_space<vmem>>, %arg3: memref<1x128xf32, #tpu.memory_space<vmem>>, %arg4: memref<128x128xf32, #tpu.memory_space<vmem>>, %arg5: memref<1x128xf32, #tpu.memory_space<vmem>>, %arg6: memref<8x128xf32, #tpu.memory_space<vmem>>) attributes {dimension_semantics = [#tpu.dimension_semantics<parallel>], iteration_bounds = array<i64: 2>, scalar_prefetch = 0 : i64, scratch_operands = 0 : i64, tpu.core_type = #tpu.core_type<tc>, window_params = [{transform_indices = @transform_0, window_bounds = array<i64: 8, 128>}, {pipeline_mode = #tpu.pipeline_mode<synchronous>, transform_indices = @transform_1, window_bounds = array<i64: 128, 128>}, {pipeline_mode = #tpu.pipeline_mode<synchronous>, transform_indices = @transform_2, window_bounds = array<i64: 1, 128>}, {pipeline_mode = #tpu.pipeline_mode<synchronous>, transform_indices = @transform_3, window_bounds = array<i64: 128, 128>}, {pipeline_mode = #tpu.pipeline_mode<synchronous>, transform_indices = @transform_4, window_bounds = array<i64: 1, 128>}, {transform_indices = @transform_5, window_bounds = array<i64: 8, 128>}]} {
    %c0 = arith.constant 0 : index
    %c0_0 = arith.constant 0 : index
    %0 = vector.load %arg1[%c0, %c0_0] : memref<8x128xf32, #tpu.memory_space<vmem>>, vector<8x128xf32>
    %c0_1 = arith.constant 0 : index
    %c0_2 = arith.constant 0 : index
    %1 = vector.load %arg2[%c0_1, %c0_2] : memref<128x128xf32, #tpu.memory_space<vmem>>, vector<128x128xf32>
    %cst = arith.constant dense<0.000000e+00> : vector<8x128xf32>
    %2 = tpu.matmul %0, %1, %cst {dimension_numbers = #tpu.dot_dimension_numbers<[1], [0], [0], [1], [0, 0, 1, 1], [], []>} : vector<8x128xf32>, vector<128x128xf32>, vector<8x128xf32> -> vector<8x128xf32>
    %c0_3 = arith.constant 0 : index
    %c0_4 = arith.constant 0 : index
    %3 = vector.load %arg3[%c0_3, %c0_4] : memref<1x128xf32, #tpu.memory_space<vmem>>, vector<1x128xf32>
    %4 = vector.broadcast %3 : vector<1x128xf32> to vector<8x128xf32>
    %5 = arith.addf %2, %4 : vector<8x128xf32>
    %6 = arith.mulf %5, %5 : vector<8x128xf32>
    %7 = arith.mulf %5, %6 : vector<8x128xf32>
    %cst_5 = arith.constant 4.471500e-02 : f32
    %8 = vector.broadcast %cst_5 : f32 to vector<8x128xf32>
    %9 = arith.mulf %8, %7 : vector<8x128xf32>
    %10 = arith.addf %5, %9 : vector<8x128xf32>
    %cst_6 = arith.constant 0.797884583 : f32
    %11 = vector.broadcast %cst_6 : f32 to vector<8x128xf32>
    %12 = arith.mulf %11, %10 : vector<8x128xf32>
    %13 = math.tanh %12 : vector<8x128xf32>
    %cst_7 = arith.constant 1.000000e+00 : f32
    %14 = vector.broadcast %cst_7 : f32 to vector<8x128xf32>
    %15 = arith.addf %14, %13 : vector<8x128xf32>
    %cst_8 = arith.constant 5.000000e-01 : f32
    %16 = vector.broadcast %cst_8 : f32 to vector<8x128xf32>
    %17 = arith.mulf %16, %15 : vector<8x128xf32>
    %18 = arith.mulf %5, %17 : vector<8x128xf32>
    %c0_9 = arith.constant 0 : index
    %c0_10 = arith.constant 0 : index
    %19 = vector.load %arg4[%c0_9, %c0_10] : memref<128x128xf32, #tpu.memory_space<vmem>>, vector<128x128xf32>
    %cst_11 = arith.constant dense<0.000000e+00> : vector<8x128xf32>
    %20 = tpu.matmul %18, %19, %cst_11 {dimension_numbers = #tpu.dot_dimension_numbers<[1], [0], [0], [1], [0, 0, 1, 1], [], []>} : vector<8x128xf32>, vector<128x128xf32>, vector<8x128xf32> -> vector<8x128xf32>
    %c0_12 = arith.constant 0 : index
    %c0_13 = arith.constant 0 : index
    %21 = vector.load %arg5[%c0_12, %c0_13] : memref<1x128xf32, #tpu.memory_space<vmem>>, vector<1x128xf32>
    %22 = vector.broadcast %21 : vector<1x128xf32> to vector<8x128xf32>
    %23 = arith.addf %20, %22 : vector<8x128xf32>
    %c0_14 = arith.constant 0 : index
    %c0_15 = arith.constant 0 : index
    %24 = vector.load %arg6[%c0_14, %c0_15] : memref<8x128xf32, #tpu.memory_space<vmem>>, vector<8x128xf32>
    tpu.vector_store %arg6[%c0_14, %c0_15], %23 {strides = array<i32>} : memref<8x128xf32, #tpu.memory_space<vmem>>, vector<8x128xf32>,
    return
  }
  func.func @transform_0(%arg0: i32) -> (i32, i32) {
    %c0_i32 = arith.constant 0 : i32
    %c0_i32_0 = arith.constant 0 : i32
    return %arg0, %c0_i32 : i32, i32
  }
  func.func @transform_1(%arg0: i32) -> (i32, i32) {
    %c0_i32 = arith.constant 0 : i32
    %c0_i32_0 = arith.constant 0 : i32
    %c0_i32_1 = arith.constant 0 : i32
    return %c0_i32, %c0_i32_0 : i32, i32
  }
  func.func @transform_2(%arg0: i32) -> (i32, i32) {
    %c0_i32 = arith.constant 0 : i32
    %c0_i32_0 = arith.constant 0 : i32
    %c0_i32_1 = arith.constant 0 : i32
    return %c0_i32, %c0_i32_0 : i32, i32
  }
  func.func @transform_3(%arg0: i32) -> (i32, i32) {
    %c0_i32 = arith.constant 0 : i32
    %c0_i32_0 = arith.constant 0 : i32
    %c0_i32_1 = arith.constant 0 : i32
    return %c0_i32, %c0_i32_0 : i32, i32
  }
  func.func @transform_4(%arg0: i32) -> (i32, i32) {
    %c0_i32 = arith.constant 0 : i32
    %c0_i32_0 = arith.constant 0 : i32
    %c0_i32_1 = arith.constant 0 : i32
    return %c0_i32, %c0_i32_0 : i32, i32
  }
  func.func @transform_5(%arg0: i32) -> (i32, i32) {
    %c0_i32 = arith.constant 0 : i32
    %c0_i32_0 = arith.constant 0 : i32
    return %arg0, %c0_i32 : i32, i32
  }
}

</mosaic_0001>

<llo_original>
// kernel: tpu_custom_call.1
$region0: #{tpu_custom_call.1}
  #allocation0 [shape = 'u32[]', space=smem, size = 0x4, offset = 0x4, fixed_abs, tag = 'smem constant byte address 0x4 - core index']
  #allocation1 [shape = 'u32[72,128]{1,0:T(1,128)}', space=vmem, size = 0x9000, scoped, tag = 'internal scratch']
  %s0 = inlined_call_operand.hbm [shape: f32[16,128], index: 0, kind: input, shape index: {}]
  %s1 = inlined_call_operand.hbm [shape: f32[128,128], index: 1, kind: input, shape index: {}]
  %s2 = inlined_call_operand.vmem [shape: f32[1,128], index: 2, kind: input, shape index: {}]
  %s3 = inlined_call_operand.hbm [shape: f32[128,128], index: 3, kind: input, shape index: {}]
  %s4 = inlined_call_operand.vmem [shape: f32[1,128], index: 4, kind: input, shape index: {}]
  %s5 = inlined_call_operand.hbm [shape: f32[16,128], index: 5, kind: output, shape index: {}]
  %s6 = sld [smem:[#allocation0]]
  $region65: #{tpu_custom_call.1} parent=0
    _
  %s8 = ssub.s32 1, %s6
  %s9 = scalar_select 0, %s8, %s6
  $region1: #{tpu_custom_call.1} parent=0
    #allocation2 [shape = 'u8[8192]{0}', space=vmem, size = 0x2000, scoped, tag = 'input window, operand 0']
    #allocation3 [shape = 's32[2]{0}', space=sflag, size = 0x8, scoped, tag = 'scoped memory for tpu_custom_call.1']
    #allocation4 [shape = 's32[2]{0}', space=sflag, size = 0x8, scoped, tag = 'scoped memory for tpu_custom_call.1']
    #allocation5 [shape = 'u8[65536]{0}', space=vmem, size = 0x10000, scoped, tag = 'input window, operand 1, single buffered']
    #allocation6 [shape = 's32[1]{0}', space=sflag, size = 0x4, scoped, tag = 'scoped memory for tpu_custom_call.1']
    #allocation7 [shape = 'u8[65536]{0}', space=vmem, size = 0x10000, scoped, tag = 'input window, operand 3, single buffered']
    #allocation8 [shape = 'u8[8192]{0}', space=vmem, size = 0x2000, scoped, tag = 'output window, operand 0']
    %10 = vsyncpa [#allocation3], 0
    %s11 = scalar_lea.sflag [#allocation3], 1
    %12 = vsyncpa %s11, 0
    %13 = vsyncpa [#allocation6], 0
    %14 = vsyncpa [#allocation4], 0
    %s15 = scalar_lea.sflag [#allocation4], 1
    %16 = vsyncpa %s15, 0
    loop: start=0, step=1, limit=4
    $region2: #{tpu_custom_call.1} parent=1 // loop_pre_header
      _
    $region3: #{tpu_custom_call.1} parent=1 // loop_header
      %s18 = sphi 0, %s22
      %p19 = scmp.ge.s32.totalorder %s18, 4
      %s28 = sphi 0, %s30
      %s31 = sphi 0, %s28
      %s32 = sphi 0, %s31
      %s48 = sphi 0, %s32
      %s52 = sphi 0, %s52
      %s54 = sphi 0, %s52
      %s55 = sphi 0, %s54
      %s69 = sphi 0, %s55
      %s73 = sphi 0, %s73
      %s75 = sphi 0, %s73
      %s76 = sphi 0, %s75
      %s90 = sphi 0, %s76
      %s94 = sphi 0, %s94
      %s96 = sphi 0, %s94
      %s97 = sphi 0, %s96
      %s111 = sphi 0, %s97
      %s115 = sphi 0, %s115
      %s117 = sphi 0, %s115
      %s118 = sphi 0, %s117
      %s132 = sphi 0, %s118
      %s138 = sphi 0, %s140
      %s141 = sphi 0, %s138
      %s142 = sphi 0, %s141
      %s158 = sphi 0, %s142
    $region4: #{tpu_custom_call.1} parent=1 // loop_header_branch
      %21 = sbr.rel (%p19) target = $region8
    $region5: #{tpu_custom_call.1} parent=1 // loop_body
      %s23 = ssub.s32 %s18, 1
      %s24 = ssub.s32 %s18, 2
      %s25 = sadd.s32 %s18, 1
      %s26 = ssub.s32 %s18, %s25
      %p27 = scmp.eq.s32.totalorder %s26, 0
      %s29 = sadd.s32 %s28, 1
      %s30 = scalar_select %p27, %s28, %s29
      %p33 = pneg %p27
      %p34 = scmp.eq.s32.totalorder %s18, 1
      %p35 = por %p33, %p34
      %p36 = scmp.ne.s32.totalorder %s28, %s31
      %p37 = scmp.eq.s32.totalorder %s18, 0
      %p38 = por %p36, %p37
      %p39 = scmp.ne.s32.totalorder %s28, %s31
      %p40 = scmp.eq.s32.totalorder %s23, 1
      %p41 = por %p39, %p40
      %p42 = scmp.ne.s32.totalorder %s31, %s32
      %p43 = scmp.eq.s32.totalorder %s23, 0
      %p44 = por %p42, %p43
      %p45 = scmp.ne.s32.totalorder %s31, %s32
      %p46 = scmp.eq.s32.totalorder %s24, 1
      %p47 = por %p45, %p46
      %p49 = scmp.ne.s32.totalorder %s32, %s48
      %p50 = scmp.eq.s32.totalorder %s24, 0
      %p51 = por %p49, %p50
      %s53 = sadd.s32 %s52, 1
      %p56 = scmp.eq.s32.totalorder %s18, 1
      %p57 = scmp.ne.s32.totalorder %s52, %s54
      %p58 = scmp.eq.s32.totalorder %s18, 0
      %p59 = por %p57, %p58
      %p60 = scmp.ne.s32.totalorder %s52, %s54
      %p61 = scmp.eq.s32.totalorder %s23, 1
      %p62 = por %p60, %p61
      %p63 = scmp.ne.s32.totalorder %s54, %s55
      %p64 = scmp.eq.s32.totalorder %s23, 0
      %p65 = por %p63, %p64
      %p66 = scmp.ne.s32.totalorder %s54, %s55
      %p67 = scmp.eq.s32.totalorder %s24, 1
      %p68 = por %p66, %p67
      %p70 = scmp.ne.s32.totalorder %s55, %s69
      %p71 = scmp.eq.s32.totalorder %s24, 0
      %p72 = por %p70, %p71
      %s74 = sadd.s32 %s73, 1
      %p77 = scmp.eq.s32.totalorder %s18, 1
      %p78 = scmp.ne.s32.totalorder %s73, %s75
      %p79 = scmp.eq.s32.totalorder %s18, 0
      %p80 = por %p78, %p79
      %p81 = scmp.ne.s32.totalorder %s73, %s75
      %p82 = scmp.eq.s32.totalorder %s23, 1
      %p83 = por %p81, %p82
      %p84 = scmp.ne.s32.totalorder %s75, %s76
      %p85 = scmp.eq.s32.totalorder %s23, 0
      %p86 = por %p84, %p85
      %p87 = scmp.ne.s32.totalorder %s75, %s76
      %p88 = scmp.eq.s32.totalorder %s24, 1
      %p89 = por %p87, %p88
      %p91 = scmp.ne.s32.totalorder %s76, %s90
      %p92 = scmp.eq.s32.totalorder %s24, 0
      %p93 = por %p91, %p92
      %s95 = sadd.s32 %s94, 1
      %p98 = scmp.eq.s32.totalorder %s18, 1
      %p99 = scmp.ne.s32.totalorder %s94, %s96
      %p100 = scmp.eq.s32.totalorder %s18, 0
      %p101 = por %p99, %p100
      %p102 = scmp.ne.s32.totalorder %s94, %s96
      %p103 = scmp.eq.s32.totalorder %s23, 1
      %p104 = por %p102, %p103
      %p105 = scmp.ne.s32.totalorder %s96, %s97
      %p106 = scmp.eq.s32.totalorder %s23, 0
      %p107 = por %p105, %p106
      %p108 = scmp.ne.s32.totalorder %s96, %s97
      %p109 = scmp.eq.s32.totalorder %s24, 1
      %p110 = por %p108, %p109
      %p112 = scmp.ne.s32.totalorder %s97, %s111
      %p113 = scmp.eq.s32.totalorder %s24, 0
      %p114 = por %p112, %p113
      %s116 = sadd.s32 %s115, 1
      %p119 = scmp.eq.s32.totalorder %s18, 1
      %p120 = scmp.ne.s32.totalorder %s115, %s117
      %p121 = scmp.eq.s32.totalorder %s18, 0
      %p122 = por %p120, %p121
      %p123 = scmp.ne.s32.totalorder %s115, %s117
      %p124 = scmp.eq.s32.totalorder %s23, 1
      %p125 = por %p123, %p124
      %p126 = scmp.ne.s32.totalorder %s117, %s118
      %p127 = scmp.eq.s32.totalorder %s23, 0
      %p128 = por %p126, %p127
      %p129 = scmp.ne.s32.totalorder %s117, %s118
      %p130 = scmp.eq.s32.totalorder %s24, 1
      %p131 = por %p129, %p130
      %p133 = scmp.ne.s32.totalorder %s118, %s132
      %p134 = scmp.eq.s32.totalorder %s24, 0
      %p135 = por %p133, %p134
      %s136 = ssub.s32 %s18, %s25
      %p137 = scmp.eq.s32.totalorder %s136, 0
      %s139 = sadd.s32 %s138, 1
      %s140 = scalar_select %p137, %s138, %s139
      %p143 = pneg %p137
      %p144 = scmp.eq.s32.totalorder %s18, 1
      %p145 = por %p143, %p144
      %p146 = scmp.ne.s32.totalorder %s138, %s141
      %p147 = scmp.eq.s32.totalorder %s18, 0
      %p148 = por %p146, %p147
      %p149 = scmp.ne.s32.totalorder %s138, %s141
      %p150 = scmp.eq.s32.totalorder %s23, 1
      %p151 = por %p149, %p150
      %p152 = scmp.ne.s32.totalorder %s141, %s142
      %p153 = scmp.eq.s32.totalorder %s23, 0
      %p154 = por %p152, %p153
      %p155 = scmp.ne.s32.totalorder %s141, %s142
      %p156 = scmp.eq.s32.totalorder %s24, 1
      %p157 = por %p155, %p156
      %p159 = scmp.ne.s32.totalorder %s142, %s158
      %p160 = scmp.eq.s32.totalorder %s24, 0
      %p161 = por %p159, %p160
      %p162 = scmp.le.s32.totalorder 1, %s18
      %p163 = scmp.lt.s32.totalorder %s18, 3
      %p164 = pnand %p162, %p163
      %p165 = pneg %p164
      // Predicated region
      $region9: #{tpu_custom_call.1} parent=5 // pred_check
        _
      $region10: #{tpu_custom_call.1} parent=5 // pred_check_branch
        %167 = sbr.rel (%p164) target = $region12
      $region11: #{tpu_custom_call.1} parent=5 // pred_region
        %s168 = ssub.s32 %s18, 1
        // Predicated region
        $region13: #{tpu_custom_call.1} parent=11 // pred_check
          %p169 = pneg %p65
        $region14: #{tpu_custom_call.1} parent=11 // pred_check_branch
          %171 = sbr.rel (%p169) target = $region16
        $region15: #{tpu_custom_call.1} parent=11 // pred_region
          %173 = vsyncadd [#allocation6], 0
          %s174 = sshll.u32 %s1, 4
          %s175 = int_to_ptr.hbm [resolvable:$true] %s174
          %s176 = sshll.u32 [#allocation5], 4
          %s177 = int_to_ptr.vmem [resolvable:$true] %s176
          %182 = dma.hbm_to_vmem [thread:$0]  %s175, 2048, %s177, [#allocation6], 128, 128, 8
        $region16: #{tpu_custom_call.1} parent=11 // pred_fallthru
          _
        // Predicated region
        $region17: #{tpu_custom_call.1} parent=11 // pred_check
          %p183 = pneg %p86
        $region18: #{tpu_custom_call.1} parent=11 // pred_check_branch
          %185 = sbr.rel (%p183) target = $region20
        $region19: #{tpu_custom_call.1} parent=11 // pred_region
          _
        $region20: #{tpu_custom_call.1} parent=11 // pred_fallthru
          _
        // Predicated region
        $region21: #{tpu_custom_call.1} parent=11 // pred_check
          %p186 = pneg %p107
        $region22: #{tpu_custom_call.1} parent=11 // pred_check_branch
          %188 = sbr.rel (%p186) target = $region24
        $region23: #{tpu_custom_call.1} parent=11 // pred_region
          %190 = vsyncadd [#allocation6], 0
          %s191 = sshll.u32 %s3, 4
          %s192 = int_to_ptr.hbm [resolvable:$true] %s191
          %s193 = sshll.u32 [#allocation7], 4
          %s194 = int_to_ptr.vmem [resolvable:$true] %s193
          %199 = dma.hbm_to_vmem [thread:$0]  %s192, 2048, %s194, [#allocation6], 128, 128, 8
        $region24: #{tpu_custom_call.1} parent=11 // pred_fallthru
          _
        // Predicated region
        $region25: #{tpu_custom_call.1} parent=11 // pred_check
          %p200 = pneg %p128
        $region26: #{tpu_custom_call.1} parent=11 // pred_check_branch
          %202 = sbr.rel (%p200) target = $region28
        $region27: #{tpu_custom_call.1} parent=11 // pred_region
          _
        $region28: #{tpu_custom_call.1} parent=11 // pred_fallthru
          _
      $region12: #{tpu_custom_call.1} parent=5 // pred_fallthru
        _
      %p203 = scmp.lt.s32.totalorder %s18, 2
      // Predicated region
      $region29: #{tpu_custom_call.1} parent=5 // pred_check
        %p204 = pneg %p203
      $region30: #{tpu_custom_call.1} parent=5 // pred_check_branch
        %206 = sbr.rel (%p204) target = $region32
      $region31: #{tpu_custom_call.1} parent=5 // pred_region
        // Predicated region
        $region33: #{tpu_custom_call.1} parent=31 // pred_check
          %p207 = pneg %p38
        $region34: #{tpu_custom_call.1} parent=31 // pred_check_branch
          %209 = sbr.rel (%p207) target = $region36
        $region35: #{tpu_custom_call.1} parent=31 // pred_region
          %s210 = sand.u32 %s28, 1
          %s211 = scalar_lea.sflag [#allocation3], %s210
          %s212 = sand.u32 %s28, 1
          %s213 = smul.addr %s212, 8
          %s214 = scalar_lea.vmem [#allocation2], %s213
          %216 = vsyncadd %s211, 0
          %s217 = smul.addr %s18, 8
          %s218 = scalar_lea.hbm %s0, %s217
          %s220 = sshll.u32 %s218, 4
          %s221 = int_to_ptr.hbm [resolvable:$true] %s220
          %s222 = sshll.u32 %s214, 4
          %s223 = int_to_ptr.vmem [resolvable:$true] %s222
          %225 = dma.hbm_to_vmem [thread:$0]  %s221, 128, %s223, %s211
        $region36: #{tpu_custom_call.1} parent=31 // pred_fallthru
          _
      $region32: #{tpu_custom_call.1} parent=5 // pred_fallthru
        _
      %p226 = scmp.le.s32.totalorder 1, %s18
      %p227 = scmp.lt.s32.totalorder %s18, 3
      %p228 = pnand %p226, %p227
      %p229 = pneg %p228
      // Predicated region
      $region37: #{tpu_custom_call.1} parent=5 // pred_check
        _
      $region38: #{tpu_custom_call.1} parent=5 // pred_check_branch
        %231 = sbr.rel (%p228) target = $region40
      $region39: #{tpu_custom_call.1} parent=5 // pred_region
        %s232 = ssub.s32 %s18, 1
        %s233 = sand.u32 %s31, 1
        %s234 = scalar_lea.sflag [#allocation3], %s233
        %s235 = sand.u32 %s31, 1
        %s236 = smul.addr %s235, 8
        %s237 = scalar_lea.vmem [#allocation2], %s236
        // Predicated region
        $region41: #{tpu_custom_call.1} parent=39 // pred_check
          %p238 = pneg %p44
        $region42: #{tpu_custom_call.1} parent=39 // pred_check_branch
          %240 = sbr.rel (%p238) target = $region44
        $region43: #{tpu_custom_call.1} parent=39 // pred_region
          %242 = dma.done %s234, 128
        $region44: #{tpu_custom_call.1} parent=39 // pred_fallthru
          _
        // Predicated region
        $region45: #{tpu_custom_call.1} parent=39 // pred_check
          %p243 = pneg %p65
        $region46: #{tpu_custom_call.1} parent=39 // pred_check_branch
          %245 = sbr.rel (%p243) target = $region48
        $region47: #{tpu_custom_call.1} parent=39 // pred_region
          %247 = dma.done [#allocation6], 2048
        $region48: #{tpu_custom_call.1} parent=39 // pred_fallthru
          _
        // Predicated region
        $region49: #{tpu_custom_call.1} parent=39 // pred_check
          %p248 = pneg %p107
        $region50: #{tpu_custom_call.1} parent=39 // pred_check_branch
          %250 = sbr.rel (%p248) target = $region52
        $region51: #{tpu_custom_call.1} parent=39 // pred_region
          %252 = dma.done [#allocation6], 2048
        $region52: #{tpu_custom_call.1} parent=39 // pred_fallthru
          _
        %s253 = sand.u32 %s31, 1
        %s254 = scalar_lea.sflag [#allocation3], %s253
        %s255 = sand.u32 %s31, 1
        %s256 = smul.addr %s255, 8
        %s257 = scalar_lea.vmem [#allocation2], %s256
        %p258 = pneg %p44
        %p259 = pneg %p41
        %p260 = pneg %p65
        %p261 = pneg %p62
        %p262 = pneg %p86
        %p263 = pneg %p83
        %p264 = pneg %p107
        %p265 = pneg %p104
        %p266 = pneg %p128
        %p267 = pneg %p125
        %p268 = pneg %p154
        %p269 = pneg %p151
        %s270 = sand.u32 %s141, 1
        %s271 = scalar_lea.sflag [#allocation4], %s270
        %s272 = sand.u32 %s141, 1
        %s273 = smul.addr %s272, 8
        %s274 = scalar_lea.vmem [#allocation8], %s273
        %v275 = vld [vmem:[%s237] sm:$0xff]
        %v276 = vld [vmem:[#allocation5] sm:$0xff]
        %v277 = vld [vmem:[#allocation5 + $0x8] sm:$0xff]
        %v278 = vld [vmem:[#allocation5 + $0x10] sm:$0xff]
        %v279 = vld [vmem:[#allocation5 + $0x18] sm:$0xff]
        %v280 = vld [vmem:[#allocation5 + $0x20] sm:$0xff]
        %v281 = vld [vmem:[#allocation5 + $0x28] sm:$0xff]
        %v282 = vld [vmem:[#allocation5 + $0x30] sm:$0xff]
        %v283 = vld [vmem:[#allocation5 + $0x38] sm:$0xff]
        %v284 = vld [vmem:[#allocation5 + $0x40] sm:$0xff]
        %v285 = vld [vmem:[#allocation5 + $0x48] sm:$0xff]
        %v286 = vld [vmem:[#allocation5 + $0x50] sm:$0xff]
        %v287 = vld [vmem:[#allocation5 + $0x58] sm:$0xff]
        %v288 = vld [vmem:[#allocation5 + $0x60] sm:$0xff]
        %v289 = vld [vmem:[#allocation5 + $0x68] sm:$0xff]
        %v290 = vld [vmem:[#allocation5 + $0x70] sm:$0xff]
        %v291 = vld [vmem:[#allocation5 + $0x78] sm:$0xff]
        %v292 = vld [vmem:[%s2] sm:$0x1]
        %v294 = vperm.slane %v292, 0
        %296 = vmatpush.msra.mxu0 %v291
        %297 = vmatpush.msra.mxu0 %v290
        %298 = vmatpush.msra.mxu0 %v289
        %299 = vmatpush.msra.mxu0 %v288
        %300 = vmatpush.msra.mxu0 %v287
        %301 = vmatpush.msra.mxu0 %v286
        %302 = vmatpush.msra.mxu0 %v285
        %303 = vmatpush.msra.mxu0 %v284
        %304 = vmatpush.msra.mxu0 %v283
        %305 = vmatpush.msra.mxu0 %v282
        %306 = vmatpush.msra.mxu0 %v281
        %307 = vmatpush.msra.mxu0 %v280
        %308 = vmatpush.msra.mxu0 %v279
        %309 = vmatpush.msra.mxu0 %v278
        %310 = vmatpush.msra.mxu0 %v277
        %311 = vmatpush.msra.mxu0 %v276
        %312 = vmatmul.f32.gmra.mxu0 %v275
        %v313 = vpop.f32.mrf.mxu0
        %v314 = vadd.f32 %v294, %v313
        %315 = vdwg.mxu0
        %v316 = vmul.f32 %v314, %v314
        %v317 = vmul.f32 %v314, %v316
        %v318 = vmul.f32 %v317, 0.044715
        %v319 = vadd.f32 %v314, %v318
        %v320 = vmul.f32 %v319, 0.7978846
        %v321 = vtanh.pop %v320
        %v322 = vadd.f32 %v321, 1.0
        %v323 = vmul.f32 %v322, 0.5
        %v324 = vmul.f32 %v314, %v323
        %v325 = vld [vmem:[#allocation7] sm:$0xff]
        %v326 = vld [vmem:[#allocation7 + $0x8] sm:$0xff]
        %v327 = vld [vmem:[#allocation7 + $0x10] sm:$0xff]
        %v328 = vld [vmem:[#allocation7 + $0x18] sm:$0xff]
        %v329 = vld [vmem:[#allocation7 + $0x20] sm:$0xff]
        %v330 = vld [vmem:[#allocation7 + $0x28] sm:$0xff]
        %v331 = vld [vmem:[#allocation7 + $0x30] sm:$0xff]
        %v332 = vld [vmem:[#allocation7 + $0x38] sm:$0xff]
        %v333 = vld [vmem:[#allocation7 + $0x40] sm:$0xff]
        %v334 = vld [vmem:[#allocation7 + $0x48] sm:$0xff]
        %v335 = vld [vmem:[#allocation7 + $0x50] sm:$0xff]
        %v336 = vld [vmem:[#allocation7 + $0x58] sm:$0xff]
        %v337 = vld [vmem:[#allocation7 + $0x60] sm:$0xff]
        %v338 = vld [vmem:[#allocation7 + $0x68] sm:$0xff]
        %v339 = vld [vmem:[#allocation7 + $0x70] sm:$0xff]
        %v340 = vld [vmem:[#allocation7 + $0x78] sm:$0xff]
        %v341 = vld [vmem:[%s4] sm:$0x1]
        %v343 = vperm.slane %v341, 0
        %345 = vmatpush.msra.mxu0 %v340
        %346 = vmatpush.msra.mxu0 %v339
        %347 = vmatpush.msra.mxu0 %v338
        %348 = vmatpush.msra.mxu0 %v337
        %349 = vmatpush.msra.mxu0 %v336
        %350 = vmatpush.msra.mxu0 %v335
        %351 = vmatpush.msra.mxu0 %v334
        %352 = vmatpush.msra.mxu0 %v333
        %353 = vmatpush.msra.mxu0 %v332
        %354 = vmatpush.msra.mxu0 %v331
        %355 = vmatpush.msra.mxu0 %v330
        %356 = vmatpush.msra.mxu0 %v329
        %357 = vmatpush.msra.mxu0 %v328
        %358 = vmatpush.msra.mxu0 %v327
        %359 = vmatpush.msra.mxu0 %v326
        %360 = vmatpush.msra.mxu0 %v325
        %361 = vmatmul.f32.gmra.mxu0 %v324
        %v362 = vpop.f32.mrf.mxu0
        %v363 = vadd.f32 %v343, %v362
        %364 = vdwg.mxu0
        %365 = vst [vmem:[%s274] sm:$0xff] %v363
        %s366 = sand.u32 %s141, 1
        %s367 = scalar_lea.sflag [#allocation4], %s366
        %s368 = sand.u32 %s141, 1
        %s369 = smul.addr %s368, 8
        %s370 = scalar_lea.vmem [#allocation8], %s369
        // Predicated region
        $region53: #{tpu_custom_call.1} parent=39 // pred_check
          %p371 = pneg %p151
        $region54: #{tpu_custom_call.1} parent=39 // pred_check_branch
          %373 = sbr.rel (%p371) target = $region56
        $region55: #{tpu_custom_call.1} parent=39 // pred_region
          %375 = vsyncadd %s367, 0
          %s376 = smul.addr %s23, 8
          %s377 = scalar_lea.hbm %s5, %s376
          %s379 = sshll.u32 %s370, 4
          %s380 = int_to_ptr.vmem [resolvable:$true] %s379
          %s381 = sshll.u32 %s377, 4
          %s382 = int_to_ptr.hbm [resolvable:$true] %s381
          %384 = dma.vmem_to_hbm [thread:$0]  %s380, 128, %s382, %s367
        $region56: #{tpu_custom_call.1} parent=39 // pred_fallthru
          _
      $region40: #{tpu_custom_call.1} parent=5 // pred_fallthru
        _
      %p385 = scmp.le.s32.totalorder 2, %s18
      // Predicated region
      $region57: #{tpu_custom_call.1} parent=5 // pred_check
        %p386 = pneg %p385
      $region58: #{tpu_custom_call.1} parent=5 // pred_check_branch
        %388 = sbr.rel (%p386) target = $region60
      $region59: #{tpu_custom_call.1} parent=5 // pred_region
        %s389 = ssub.s32 %s18, 2
        // Predicated region
        $region61: #{tpu_custom_call.1} parent=59 // pred_check
          %p390 = pneg %p157
        $region62: #{tpu_custom_call.1} parent=59 // pred_check_branch
          %392 = sbr.rel (%p390) target = $region64
        $region63: #{tpu_custom_call.1} parent=59 // pred_region
          %s393 = sand.u32 %s142, 1
          %s394 = scalar_lea.sflag [#allocation4], %s393
          %s395 = sand.u32 %s142, 1
          %s396 = smul.addr %s395, 8
          %s397 = scalar_lea.vmem [#allocation8], %s396
          %399 = dma.done %s394, 128
        $region64: #{tpu_custom_call.1} parent=59 // pred_fallthru
          _
      $region60: #{tpu_custom_call.1} parent=5 // pred_fallthru
        _
    $region6: #{tpu_custom_call.1} parent=1 // loop_footer
      %s22 = sadd.s32 1, %s18
    $region7: #{tpu_custom_call.1} parent=1 // loop_footer_branch
      %17 = sbr.rel target = $region3
    $region8: #{tpu_custom_call.1} parent=1 // loop_exit
      _
    %400 = vsyncpa [#allocation3], 1
    %s401 = scalar_lea.sflag [#allocation3], 1
    %402 = vsyncpa %s401, 1
    %403 = vsyncpa [#allocation6], 1
    %404 = vsyncpa [#allocation4], 1
    %s405 = scalar_lea.sflag [#allocation4], 1
    %406 = vsyncpa %s405, 1

// kernel: tpu_custom_call.1
$region0: #{tpu_custom_call.1}
  #allocation0 [shape = 'u32[]', space=smem, size = 0x4, offset = 0x4, fixed_abs, tag = 'smem constant byte address 0x4 - core index']
  #allocation1 [shape = 'u32[72,128]{1,0:T(1,128)}', space=vmem, size = 0x9000, scoped, tag = 'internal scratch']
  %s0 = inlined_call_operand.hbm [shape: f32[16,128], index: 0, kind: input, shape index: {}]
  %s1 = inlined_call_operand.hbm [shape: f32[128,128], index: 1, kind: input, shape index: {}]
  %s2 = inlined_call_operand.vmem [shape: f32[1,128], index: 2, kind: input, shape index: {}]
  %s3 = inlined_call_operand.hbm [shape: f32[128,128], index: 3, kind: input, shape index: {}]
  %s4 = inlined_call_operand.vmem [shape: f32[1,128], index: 4, kind: input, shape index: {}]
  %s5 = inlined_call_operand.hbm [shape: f32[16,128], index: 5, kind: output, shape index: {}]
  %s6 = sld [smem:[#allocation0]]
  $region65: #{tpu_custom_call.1} parent=0
    _
  %s8 = ssub.s32 1, %s6
  %s9 = scalar_select 0, %s8, %s6
  $region1: #{tpu_custom_call.1} parent=0
    #allocation2 [shape = 'u8[8192]{0}', space=vmem, size = 0x2000, scoped, tag = 'input window, operand 0']
    #allocation3 [shape = 's32[2]{0}', space=sflag, size = 0x8, scoped, tag = 'scoped memory for tpu_custom_call.1']
    #allocation4 [shape = 's32[2]{0}', space=sflag, size = 0x8, scoped, tag = 'scoped memory for tpu_custom_call.1']
    #allocation5 [shape = 'u8[65536]{0}', space=vmem, size = 0x10000, scoped, tag = 'input window, operand 1, single buffered']
    #allocation6 [shape = 's32[1]{0}', space=sflag, size = 0x4, scoped, tag = 'scoped memory for tpu_custom_call.1']
    #allocation7 [shape = 'u8[65536]{0}', space=vmem, size = 0x10000, scoped, tag = 'input window, operand 3, single buffered']
    #allocation8 [shape = 'u8[8192]{0}', space=vmem, size = 0x2000, scoped, tag = 'output window, operand 0']
    %10 = vsyncpa [#allocation3], 0
    %s11 = scalar_lea.sflag [#allocation3], 1
    %12 = vsyncpa %s11, 0
    %13 = vsyncpa [#allocation6], 0
    %14 = vsyncpa [#allocation4], 0
    %s15 = scalar_lea.sflag [#allocation4], 1
    %16 = vsyncpa %s15, 0
    loop: start=0, step=1, limit=4
    $region2: #{tpu_custom_call.1} parent=1 // loop_pre_header
      _
    $region3: #{tpu_custom_call.1} parent=1 // loop_header
      %s18 = sphi 0, %s22
      %p19 = scmp.ge.s32.totalorder %s18, 4
      %s28 = sphi 0, %s30
      %s31 = sphi 0, %s28
      %s32 = sphi 0, %s31
      %s48 = sphi 0, %s32
      %s52 = sphi 0, %s52
      %s54 = sphi 0, %s52
      %s55 = sphi 0, %s54
      %s69 = sphi 0, %s55
      %s73 = sphi 0, %s73
      %s75 = sphi 0, %s73
      %s76 = sphi 0, %s75
      %s90 = sphi 0, %s76
      %s94 = sphi 0, %s94
      %s96 = sphi 0, %s94
      %s97 = sphi 0, %s96
      %s111 = sphi 0, %s97
      %s115 = sphi 0, %s115
      %s117 = sphi 0, %s115
      %s118 = sphi 0, %s117
      %s132 = sphi 0, %s118
      %s138 = sphi 0, %s140
      %s141 = sphi 0, %s138
      %s142 = sphi 0, %s141
      %s158 = sphi 0, %s142
    $region4: #{tpu_custom_call.1} parent=1 // loop_header_branch
      %21 = sbr.rel (%p19) target = $region8
    $region5: #{tpu_custom_call.1} parent=1 // loop_body
      %s23 = ssub.s32 %s18, 1
      %s24 = ssub.s32 %s18, 2
      %s25 = sadd.s32 %s18, 1
      %s26 = ssub.s32 %s18, %s25
      %p27 = scmp.eq.s32.totalorder %s26, 0
      %s29 = sadd.s32 %s28, 1
      %s30 = scalar_select %p27, %s28, %s29
      %p33 = pneg %p27
      %p34 = scmp.eq.s32.totalorder %s18, 1
      %p35 = por %p33, %p34
      %p36 = scmp.ne.s32.totalorder %s28, %s31
      %p37 = scmp.eq.s32.totalorder %s18, 0
      %p38 = por %p36, %p37
      %p39 = scmp.ne.s32.totalorder %s28, %s31
      %p40 = scmp.eq.s32.totalorder %s23, 1
      %p41 = por %p39, %p40
      %p42 = scmp.ne.s32.totalorder %s31, %s32
      %p43 = scmp.eq.s32.totalorder %s23, 0
      %p44 = por %p42, %p43
      %p45 = scmp.ne.s32.totalorder %s31, %s32
      %p46 = scmp.eq.s32.totalorder %s24, 1
      %p47 = por %p45, %p46
      %p49 = scmp.ne.s32.totalorder %s32, %s48
      %p50 = scmp.eq.s32.totalorder %s24, 0
      %p51 = por %p49, %p50
      %s53 = sadd.s32 %s52, 1
      %p56 = scmp.eq.s32.totalorder %s18, 1
      %p57 = scmp.ne.s32.totalorder %s52, %s54
      %p58 = scmp.eq.s32.totalorder %s18, 0
      %p59 = por %p57, %p58
      %p60 = scmp.ne.s32.totalorder %s52, %s54
      %p61 = scmp.eq.s32.totalorder %s23, 1
      %p62 = por %p60, %p61
      %p63 = scmp.ne.s32.totalorder %s54, %s55
      %p64 = scmp.eq.s32.totalorder %s23, 0
      %p65 = por %p63, %p64
      %p66 = scmp.ne.s32.totalorder %s54, %s55
      %p67 = scmp.eq.s32.totalorder %s24, 1
      %p68 = por %p66, %p67
      %p70 = scmp.ne.s32.totalorder %s55, %s69
      %p71 = scmp.eq.s32.totalorder %s24, 0
      %p72 = por %p70, %p71
      %s74 = sadd.s32 %s73, 1
      %p77 = scmp.eq.s32.totalorder %s18, 1
      %p78 = scmp.ne.s32.totalorder %s73, %s75
      %p79 = scmp.eq.s32.totalorder %s18, 0
      %p80 = por %p78, %p79
      %p81 = scmp.ne.s32.totalorder %s73, %s75
      %p82 = scmp.eq.s32.totalorder %s23, 1
      %p83 = por %p81, %p82
      %p84 = scmp.ne.s32.totalorder %s75, %s76
      %p85 = scmp.eq.s32.totalorder %s23, 0
      %p86 = por %p84, %p85
      %p87 = scmp.ne.s32.totalorder %s75, %s76
      %p88 = scmp.eq.s32.totalorder %s24, 1
      %p89 = por %p87, %p88
      %p91 = scmp.ne.s32.totalorder %s76, %s90
      %p92 = scmp.eq.s32.totalorder %s24, 0
      %p93 = por %p91, %p92
      %s95 = sadd.s32 %s94, 1
      %p98 = scmp.eq.s32.totalorder %s18, 1
      %p99 = scmp.ne.s32.totalorder %s94, %s96
      %p100 = scmp.eq.s32.totalorder %s18, 0
      %p101 = por %p99, %p100
      %p102 = scmp.ne.s32.totalorder %s94, %s96
      %p103 = scmp.eq.s32.totalorder %s23, 1
      %p104 = por %p102, %p103
      %p105 = scmp.ne.s32.totalorder %s96, %s97
      %p106 = scmp.eq.s32.totalorder %s23, 0
      %p107 = por %p105, %p106
      %p108 = scmp.ne.s32.totalorder %s96, %s97
      %p109 = scmp.eq.s32.totalorder %s24, 1
      %p110 = por %p108, %p109
      %p112 = scmp.ne.s32.totalorder %s97, %s111
      %p113 = scmp.eq.s32.totalorder %s24, 0
      %p114 = por %p112, %p113
      %s116 = sadd.s32 %s115, 1
      %p119 = scmp.eq.s32.totalorder %s18, 1
      %p120 = scmp.ne.s32.totalorder %s115, %s117
      %p121 = scmp.eq.s32.totalorder %s18, 0
      %p122 = por %p120, %p121
      %p123 = scmp.ne.s32.totalorder %s115, %s117
      %p124 = scmp.eq.s32.totalorder %s23, 1
      %p125 = por %p123, %p124
      %p126 = scmp.ne.s32.totalorder %s117, %s118
      %p127 = scmp.eq.s32.totalorder %s23, 0
      %p128 = por %p126, %p127
      %p129 = scmp.ne.s32.totalorder %s117, %s118
      %p130 = scmp.eq.s32.totalorder %s24, 1
      %p131 = por %p129, %p130
      %p133 = scmp.ne.s32.totalorder %s118, %s132
      %p134 = scmp.eq.s32.totalorder %s24, 0
      %p135 = por %p133, %p134
      %s136 = ssub.s32 %s18, %s25
      %p137 = scmp.eq.s32.totalorder %s136, 0
      %s139 = sadd.s32 %s138, 1
      %s140 = scalar_select %p137, %s138, %s139
      %p143 = pneg %p137
      %p144 = scmp.eq.s32.totalorder %s18, 1
      %p145 = por %p143, %p144
      %p146 = scmp.ne.s32.totalorder %s138, %s141
      %p147 = scmp.eq.s32.totalorder %s18, 0
      %p148 = por %p146, %p147
      %p149 = scmp.ne.s32.totalorder %s138, %s141
      %p150 = scmp.eq.s32.totalorder %s23, 1
      %p151 = por %p149, %p150
      %p152 = scmp.ne.s32.totalorder %s141, %s142
      %p153 = scmp.eq.s32.totalorder %s23, 0
      %p154 = por %p152, %p153
      %p155 = scmp.ne.s32.totalorder %s141, %s142
      %p156 = scmp.eq.s32.totalorder %s24, 1
      %p157 = por %p155, %p156
      %p159 = scmp.ne.s32.totalorder %s142, %s158
      %p160 = scmp.eq.s32.totalorder %s24, 0
      %p161 = por %p159, %p160
      %p162 = scmp.le.s32.totalorder 1, %s18
      %p163 = scmp.lt.s32.totalorder %s18, 3
      %p164 = pnand %p162, %p163
      %p165 = pneg %p164
      // Predicated region
      $region9: #{tpu_custom_call.1} parent=5 // pred_check
        _
      $region10: #{tpu_custom_call.1} parent=5 // pred_check_branch
        %167 = sbr.rel (%p164) target = $region12
      $region11: #{tpu_custom_call.1} parent=5 // pred_region
        %s168 = ssub.s32 %s18, 1
        // Predicated region
        $region13: #{tpu_custom_call.1} parent=11 // pred_check
          %p169 = pneg %p65
        $region14: #{tpu_custom_call.1} parent=11 // pred_check_branch
          %171 = sbr.rel (%p169) target = $region16
        $region15: #{tpu_custom_call.1} parent=11 // pred_region
          %173 = vsyncadd [#allocation6], 0
          %s174 = sshll.u32 %s1, 4
          %s175 = int_to_ptr.hbm [resolvable:$true] %s174
          %s176 = sshll.u32 [#allocation5], 4
          %s177 = int_to_ptr.vmem [resolvable:$true] %s176
          %182 = dma.hbm_to_vmem [thread:$0]  %s175, 2048, %s177, [#allocation6], 128, 128, 8
        $region16: #{tpu_custom_call.1} parent=11 // pred_fallthru
          _
        // Predicated region
        $region17: #{tpu_custom_call.1} parent=11 // pred_check
          %p183 = pneg %p86
        $region18: #{tpu_custom_call.1} parent=11 // pred_check_branch
          %185 = sbr.rel (%p183) target = $region20
        $region19: #{tpu_custom_call.1} parent=11 // pred_region
          _
        $region20: #{tpu_custom_call.1} parent=11 // pred_fallthru
          _
        // Predicated region
        $region21: #{tpu_custom_call.1} parent=11 // pred_check
          %p186 = pneg %p107
        $region22: #{tpu_custom_call.1} parent=11 // pred_check_branch
          %188 = sbr.rel (%p186) target = $region24
        $region23: #{tpu_custom_call.1} parent=11 // pred_region
          %190 = vsyncadd [#allocation6], 0
          %s191 = sshll.u32 %s3, 4
          %s192 = int_to_ptr.hbm [resolvable:$true] %s191
          %s193 = sshll.u32 [#allocation7], 4
          %s194 = int_to_ptr.vmem [resolvable:$true] %s193
          %199 = dma.hbm_to_vmem [thread:$0]  %s192, 2048, %s194, [#allocation6], 128, 128, 8
        $region24: #{tpu_custom_call.1} parent=11 // pred_fallthru
          _
        // Predicated region
        $region25: #{tpu_custom_call.1} parent=11 // pred_check
          %p200 = pneg %p128
        $region26: #{tpu_custom_call.1} parent=11 // pred_check_branch
          %202 = sbr.rel (%p200) target = $region28
        $region27: #{tpu_custom_call.1} parent=11 // pred_region
          _
        $region28: #{tpu_custom_call.1} parent=11 // pred_fallthru
          _
      $region12: #{tpu_custom_call.1} parent=5 // pred_fallthru
        _
      %p203 = scmp.lt.s32.totalorder %s18, 2
      // Predicated region
      $region29: #{tpu_custom_call.1} parent=5 // pred_check
        %p204 = pneg %p203
      $region30: #{tpu_custom_call.1} parent=5 // pred_check_branch
        %206 = sbr.rel (%p204) target = $region32
      $region31: #{tpu_custom_call.1} parent=5 // pred_region
        // Predicated region
        $region33: #{tpu_custom_call.1} parent=31 // pred_check
          %p207 = pneg %p38
        $region34: #{tpu_custom_call.1} parent=31 // pred_check_branch
          %209 = sbr.rel (%p207) target = $region36
        $region35: #{tpu_custom_call.1} parent=31 // pred_region
          %s210 = sand.u32 %s28, 1
          %s211 = scalar_lea.sflag [#allocation3], %s210
          %s212 = sand.u32 %s28, 1
          %s213 = smul.addr %s212, 8
          %s214 = scalar_lea.vmem [#allocation2], %s213
          %216 = vsyncadd %s211, 0
          %s217 = smul.addr %s18, 8
          %s218 = scalar_lea.hbm %s0, %s217
          %s220 = sshll.u32 %s218, 4
          %s221 = int_to_ptr.hbm [resolvable:$true] %s220
          %s222 = sshll.u32 %s214, 4
          %s223 = int_to_ptr.vmem [resolvable:$true] %s222
          %225 = dma.hbm_to_vmem [thread:$0]  %s221, 128, %s223, %s211
        $region36: #{tpu_custom_call.1} parent=31 // pred_fallthru
          _
      $region32: #{tpu_custom_call.1} parent=5 // pred_fallthru
        _
      %p226 = scmp.le.s32.totalorder 1, %s18
      %p227 = scmp.lt.s32.totalorder %s18, 3
      %p228 = pnand %p226, %p227
      %p229 = pneg %p228
      // Predicated region
      $region37: #{tpu_custom_call.1} parent=5 // pred_check
        _
      $region38: #{tpu_custom_call.1} parent=5 // pred_check_branch
        %231 = sbr.rel (%p228) target = $region40
      $region39: #{tpu_custom_call.1} parent=5 // pred_region
        %s232 = ssub.s32 %s18, 1
        %s233 = sand.u32 %s31, 1
        %s234 = scalar_lea.sflag [#allocation3], %s233
        %s235 = sand.u32 %s31, 1
        %s236 = smul.addr %s235, 8
        %s237 = scalar_lea.vmem [#allocation2], %s236
        // Predicated region
        $region41: #{tpu_custom_call.1} parent=39 // pred_check
          %p238 = pneg %p44
        $region42: #{tpu_custom_call.1} parent=39 // pred_check_branch
          %240 = sbr.rel (%p238) target = $region44
        $region43: #{tpu_custom_call.1} parent=39 // pred_region
          %242 = dma.done %s234, 128
        $region44: #{tpu_custom_call.1} parent=39 // pred_fallthru
          _
        // Predicated region
        $region45: #{tpu_custom_call.1} parent=39 // pred_check
          %p243 = pneg %p65
        $region46: #{tpu_custom_call.1} parent=39 // pred_check_branch
          %245 = sbr.rel (%p243) target = $region48
        $region47: #{tpu_custom_call.1} parent=39 // pred_region
          %247 = dma.done [#allocation6], 2048
        $region48: #{tpu_custom_call.1} parent=39 // pred_fallthru
          _
        // Predicated region
        $region49: #{tpu_custom_call.1} parent=39 // pred_check
          %p248 = pneg %p107
        $region50: #{tpu_custom_call.1} parent=39 // pred_check_branch
          %250 = sbr.rel (%p248) target = $region52
        $region51: #{tpu_custom_call.1} parent=39 // pred_region
          %252 = dma.done [#allocation6], 2048
        $region52: #{tpu_custom_call.1} parent=39 // pred_fallthru
          _
        %s253 = sand.u32 %s31, 1
        %s254 = scalar_lea.sflag [#allocation3], %s253
        %s255 = sand.u32 %s31, 1
        %s256 = smul.addr %s255, 8
        %s257 = scalar_lea.vmem [#allocation2], %s256
        %p258 = pneg %p44
        %p259 = pneg %p41
        %p260 = pneg %p65
        %p261 = pneg %p62
        %p262 = pneg %p86
        %p263 = pneg %p83
        %p264 = pneg %p107
        %p265 = pneg %p104
        %p266 = pneg %p128
        %p267 = pneg %p125
        %p268 = pneg %p154
        %p269 = pneg %p151
        %s270 = sand.u32 %s141, 1
        %s271 = scalar_lea.sflag [#allocation4], %s270
        %s272 = sand.u32 %s141, 1
        %s273 = smul.addr %s272, 8
        %s274 = scalar_lea.vmem [#allocation8], %s273
        %v275 = vld [vmem:[%s237] sm:$0xff]
        %v276 = vld [vmem:[#allocation5] sm:$0xff]
        %v277 = vld [vmem:[#allocation5 + $0x8] sm:$0xff]
        %v278 = vld [vmem:[#allocation5 + $0x10] sm:$0xff]
        %v279 = vld [vmem:[#allocation5 + $0x18] sm:$0xff]
        %v280 = vld [vmem:[#allocation5 + $0x20] sm:$0xff]
        %v281 = vld [vmem:[#allocation5 + $0x28] sm:$0xff]
        %v282 = vld [vmem:[#allocation5 + $0x30] sm:$0xff]
        %v283 = vld [vmem:[#allocation5 + $0x38] sm:$0xff]
        %v284 = vld [vmem:[#allocation5 + $0x40] sm:$0xff]
        %v285 = vld [vmem:[#allocation5 + $0x48] sm:$0xff]
        %v286 = vld [vmem:[#allocation5 + $0x50] sm:$0xff]
        %v287 = vld [vmem:[#allocation5 + $0x58] sm:$0xff]
        %v288 = vld [vmem:[#allocation5 + $0x60] sm:$0xff]
        %v289 = vld [vmem:[#allocation5 + $0x68] sm:$0xff]
        %v290 = vld [vmem:[#allocation5 + $0x70] sm:$0xff]
        %v291 = vld [vmem:[#allocation5 + $0x78] sm:$0xff]
        %v292 = vld [vmem:[%s2] sm:$0x1]
        %v294 = vperm.slane %v292, 0
        %296 = vmatpush.msra.mxu0 %v291
        %297 = vmatpush.msra.mxu0 %v290
        %298 = vmatpush.msra.mxu0 %v289
        %299 = vmatpush.msra.mxu0 %v288
        %300 = vmatpush.msra.mxu0 %v287
        %301 = vmatpush.msra.mxu0 %v286
        %302 = vmatpush.msra.mxu0 %v285
        %303 = vmatpush.msra.mxu0 %v284
        %304 = vmatpush.msra.mxu0 %v283
        %305 = vmatpush.msra.mxu0 %v282
        %306 = vmatpush.msra.mxu0 %v281
        %307 = vmatpush.msra.mxu0 %v280
        %308 = vmatpush.msra.mxu0 %v279
        %309 = vmatpush.msra.mxu0 %v278
        %310 = vmatpush.msra.mxu0 %v277
        %311 = vmatpush.msra.mxu0 %v276
        %312 = vmatmul.f32.gmra.mxu0 %v275
        %v313 = vpop.f32.mrf.mxu0
        %v314 = vadd.f32 %v294, %v313
        %315 = vdwg.mxu0
        %v316 = vmul.f32 %v314, %v314
        %v317 = vmul.f32 %v314, %v316
        %v318 = vmul.f32 %v317, 0.044715
        %v319 = vadd.f32 %v314, %v318
        %v320 = vmul.f32 %v319, 0.7978846
        %v321 = vtanh.pop %v320
        %v322 = vadd.f32 %v321, 1.0
        %v323 = vmul.f32 %v322, 0.5
        %v324 = vmul.f32 %v314, %v323
        %v325 = vld [vmem:[#allocation7] sm:$0xff]
        %v326 = vld [vmem:[#allocation7 + $0x8] sm:$0xff]
        %v327 = vld [vmem:[#allocation7 + $0x10] sm:$0xff]
        %v328 = vld [vmem:[#allocation7 + $0x18] sm:$0xff]
        %v329 = vld [vmem:[#allocation7 + $0x20] sm:$0xff]
        %v330 = vld [vmem:[#allocation7 + $0x28] sm:$0xff]
        %v331 = vld [vmem:[#allocation7 + $0x30] sm:$0xff]
        %v332 = vld [vmem:[#allocation7 + $0x38] sm:$0xff]
        %v333 = vld [vmem:[#allocation7 + $0x40] sm:$0xff]
        %v334 = vld [vmem:[#allocation7 + $0x48] sm:$0xff]
        %v335 = vld [vmem:[#allocation7 + $0x50] sm:$0xff]
        %v336 = vld [vmem:[#allocation7 + $0x58] sm:$0xff]
        %v337 = vld [vmem:[#allocation7 + $0x60] sm:$0xff]
        %v338 = vld [vmem:[#allocation7 + $0x68] sm:$0xff]
        %v339 = vld [vmem:[#allocation7 + $0x70] sm:$0xff]
        %v340 = vld [vmem:[#allocation7 + $0x78] sm:$0xff]
        %v341 = vld [vmem:[%s4] sm:$0x1]
        %v343 = vperm.slane %v341, 0
        %345 = vmatpush.msra.mxu0 %v340
        %346 = vmatpush.msra.mxu0 %v339
        %347 = vmatpush.msra.mxu0 %v338
        %348 = vmatpush.msra.mxu0 %v337
        %349 = vmatpush.msra.mxu0 %v336
        %350 = vmatpush.msra.mxu0 %v335
        %351 = vmatpush.msra.mxu0 %v334
        %352 = vmatpush.msra.mxu0 %v333
        %353 = vmatpush.msra.mxu0 %v332
        %354 = vmatpush.msra.mxu0 %v331
        %355 = vmatpush.msra.mxu0 %v330
        %356 = vmatpush.msra.mxu0 %v329
        %357 = vmatpush.msra.mxu0 %v328
        %358 = vmatpush.msra.mxu0 %v327
        %359 = vmatpush.msra.mxu0 %v326
        %360 = vmatpush.msra.mxu0 %v325
        %361 = vmatmul.f32.gmra.mxu0 %v324
        %v362 = vpop.f32.mrf.mxu0
        %v363 = vadd.f32 %v343, %v362
        %364 = vdwg.mxu0
        %365 = vst [vmem:[%s274] sm:$0xff] %v363
        %s366 = sand.u32 %s141, 1
        %s367 = scalar_lea.sflag [#allocation4], %s366
        %s368 = sand.u32 %s141, 1
        %s369 = smul.addr %s368, 8
        %s370 = scalar_lea.vmem [#allocation8], %s369
        // Predicated region
        $region53: #{tpu_custom_call.1} parent=39 // pred_check
          %p371 = pneg %p151
        $region54: #{tpu_custom_call.1} parent=39 // pred_check_branch
          %373 = sbr.rel (%p371) target = $region56
        $region55: #{tpu_custom_call.1} parent=39 // pred_region
          %375 = vsyncadd %s367, 0
          %s376 = smul.addr %s23, 8
          %s377 = scalar_lea.hbm %s5, %s376
          %s379 = sshll.u32 %s370, 4
          %s380 = int_to_ptr.vmem [resolvable:$true] %s379
          %s381 = sshll.u32 %s377, 4
          %s382 = int_to_ptr.hbm [resolvable:$true] %s381
          %384 = dma.vmem_to_hbm [thread:$0]  %s380, 128, %s382, %s367
        $region56: #{tpu_custom_call.1} parent=39 // pred_fallthru
          _
      $region40: #{tpu_custom_call.1} parent=5 // pred_fallthru
        _
      %p385 = scmp.le.s32.totalorder 2, %s18
      // Predicated region
      $region57: #{tpu_custom_call.1} parent=5 // pred_check
        %p386 = pneg %p385
      $region58: #{tpu_custom_call.1} parent=5 // pred_check_branch
        %388 = sbr.rel (%p386) target = $region60
      $region59: #{tpu_custom_call.1} parent=5 // pred_region
        %s389 = ssub.s32 %s18, 2
        // Predicated region
        $region61: #{tpu_custom_call.1} parent=59 // pred_check
          %p390 = pneg %p157
        $region62: #{tpu_custom_call.1} parent=59 // pred_check_branch
          %392 = sbr.rel (%p390) target = $region64
        $region63: #{tpu_custom_call.1} parent=59 // pred_region
          %s393 = sand.u32 %s142, 1
          %s394 = scalar_lea.sflag [#allocation4], %s393
          %s395 = sand.u32 %s142, 1
          %s396 = smul.addr %s395, 8
          %s397 = scalar_lea.vmem [#allocation8], %s396
          %399 = dma.done %s394, 128
        $region64: #{tpu_custom_call.1} parent=59 // pred_fallthru
          _
      $region60: #{tpu_custom_call.1} parent=5 // pred_fallthru
        _
    $region6: #{tpu_custom_call.1} parent=1 // loop_footer
      %s22 = sadd.s32 1, %s18
    $region7: #{tpu_custom_call.1} parent=1 // loop_footer_branch
      %17 = sbr.rel target = $region3
    $region8: #{tpu_custom_call.1} parent=1 // loop_exit
      _
    %400 = vsyncpa [#allocation3], 1
    %s401 = scalar_lea.sflag [#allocation3], 1
    %402 = vsyncpa %s401, 1
    %403 = vsyncpa [#allocation6], 1
    %404 = vsyncpa [#allocation4], 1
    %s405 = scalar_lea.sflag [#allocation4], 1
    %406 = vsyncpa %s405, 1

</llo_original>
